<compile_context>
chip_gen: v7x
topology: tpu7x:2x2x1
jax: 0.10.0
libtpu: 0.0.40
codegen_flags: <defaults>
</compile_context>

<pallas_src>
import math

import jax
import jax.numpy as jnp
from jax.experimental import pallas as pl
from jax.experimental.pallas import tpu as pltpu


def _round_up(x, m):
    return ((x + m - 1) // m) * m


_VMEM_BUDGET = 8 << 20        # total budget for double-buffered in+out blocks
_COPY_BLOCK_BYTES = 1 << 20   # target physical bytes per copy block


# ---------------------------------------------------------------------------
# Kernels
# ---------------------------------------------------------------------------
def _transpose_last2_kernel(x_ref, o_ref):
    # x_ref block: (1, tr, tc) -> o_ref block: (1, tc, tr); runs on the XLU.
    o_ref[0, :, :] = x_ref[0, :, :].T


def _copy_kernel(x_ref, o_ref):
    # Pure block-permutation copy; the permutation lives in the index_maps.
    o_ref[...] = x_ref[...]


def _outer_minor_kernel(x_ref, o_ref):
    # x_ref block: (1, ta, M, tl) -> o_ref block: (1, tl, M, ta).
    # M is small and static here, so the loop fully unrolls.
    m_extent = x_ref.shape[2]
    for m in range(m_extent):
        o_ref[0, :, m, :] = x_ref[0, :, m, :].T


# ---------------------------------------------------------------------------
# Case 1: batched transpose of the last two dims   (G, R, C) -> (G, C, R)
# ---------------------------------------------------------------------------
def _pick_tile(n):
    if n >= 512:
        return 512
    if n >= 256:
        return 256
    return 128


def _batched_transpose_last2(x):
    G, R, C = x.shape
    itemsize = x.dtype.itemsize

    # Small-shape fast path: one whole (R, C) slab per grid step.  Full
    # last-two dims are exempt from the (8,128) divisibility rule, and the
    # physical (padded) footprint is checked against the VMEM budget.
    in_phys = _round_up(R, 8) * _round_up(C, 128) * itemsize
    out_phys = _round_up(C, 8) * _round_up(R, 128) * itemsize
    if 2 * (in_phys + out_phys) <= _VMEM_BUDGET:
        return pl.pallas_call(
            _transpose_last2_kernel,
            out_shape=jax.ShapeDtypeStruct((G, C, R), x.dtype),
            grid_spec=pltpu.PrefetchScalarGridSpec(
                num_scalar_prefetch=0,
                grid=(G,),
                in_specs=[pl.BlockSpec((1, R, C), lambda g: (g, 0, 0))],
                out_specs=pl.BlockSpec((1, C, R), lambda g: (g, 0, 0)),
            ),
            compiler_params=pltpu.CompilerParams(
                dimension_semantics=("parallel",)),
        )(x)

    # General tiled path: no padding / slicing — Pallas masks ragged edge
    # tiles (block_shape stays (8,128)-aligned, which is all the rule needs).
    # Garbage read from out-of-bounds input rows/cols only ever lands in
    # out-of-bounds (masked) output positions under the i/j-swapped mapping.
    tr, tc = _pick_tile(R), _pick_tile(C)
    return pl.pallas_call(
        _transpose_last2_kernel,
        out_shape=jax.ShapeDtypeStruct((G, C, R), x.dtype),
        grid_spec=pltpu.PrefetchScalarGridSpec(
            num_scalar_prefetch=0,
            grid=(G, pl.cdiv(R, tr), pl.cdiv(C, tc)),
            in_specs=[pl.BlockSpec((1, tr, tc), lambda g, i, j: (g, i, j))],
            out_specs=pl.BlockSpec((1, tc, tr), lambda g, i, j: (g, j, i)),
        ),
        compiler_params=pltpu.CompilerParams(
            dimension_semantics=("parallel", "parallel", "parallel")),
    )(x)


# ---------------------------------------------------------------------------
# Case 2: swap two non-minormost axes — lane axis never moves; pure
# block-permutation copy with lane-/sublane-dense blocks.
# ---------------------------------------------------------------------------
def _swap_nonminor(x, d0, d1):
    S = x.shape
    O = math.prod(S[:d0])
    A = S[d0]
    M = math.prod(S[d0 + 1:d1])
    B = S[d1]
    T = math.prod(S[d1 + 1:])
    itemsize = x.dtype.itemsize

    if T % 128 == 0 and T > 128:
        # Sublane-dense trailing factorization: T -> (T//128, 128).
        Ts, Tl = T // 128, 128
        Sb = Ts if Ts <= 64 else 64          # full dim or a multiple of 8
        Tb = Tl
        lane_grid = pl.cdiv(Ts, Sb)

        def in_map(oa, b, mi, ti):
            return (oa, mi, b, ti, 0)

        def out_map(oa, b, mi, ti):
            return ((oa // A) * B + b, mi, oa % A, ti, 0)
    else:
        # Trailing axis stays whole on the lane dim (dummy sublane axis).
        Ts, Tl = 1, T
        Sb = 1
        Tb = T if T <= 32768 else 32768      # 32768 = 256 * 128
        lane_grid = pl.cdiv(T, Tb)

        def in_map(oa, b, mi, ti):
            return (oa, mi, b, 0, ti)

        def out_map(oa, b, mi, ti):
            return ((oa // A) * B + b, mi, oa % A, 0, ti)

    # Carry as many M-rows per block as fit the per-block byte target
    # (physical bytes, i.e. after sublane/lane padding).
    row_phys = _round_up(Sb, 8) * _round_up(Tb, 128) * itemsize
    Mb = max(1, min(M, _COPY_BLOCK_BYTES // max(row_phys, 1)))

    xr = x.reshape(O * A, M, B, Ts, Tl)
    out = pl.pallas_call(
        _copy_kernel,
        out_shape=jax.ShapeDtypeStruct((O * B, M, A, Ts, Tl), x.dtype),
        grid_spec=pltpu.PrefetchScalarGridSpec(
            num_scalar_prefetch=0,
            grid=(O * A, B, pl.cdiv(M, Mb), lane_grid),
            in_specs=[pl.BlockSpec((1, Mb, 1, Sb, Tb), in_map)],
            out_specs=pl.BlockSpec((1, Mb, 1, Sb, Tb), out_map),
        ),
        compiler_params=pltpu.CompilerParams(
            dimension_semantics=("parallel",) * 4),
    )(xr)

    new_shape = list(S)
    new_shape[d0], new_shape[d1] = S[d1], S[d0]
    return out.reshape(tuple(new_shape))


# ---------------------------------------------------------------------------
# Case 3: swap an outer dim with the minormost dim.
# ---------------------------------------------------------------------------
def _swap_outer_minor(x, d0):
    S = x.shape
    nd = len(S)
    O = math.prod(S[:d0])
    A = S[d0]
    M = math.prod(S[d0 + 1:nd - 1])
    L = S[-1]
    itemsize = x.dtype.itemsize
    new_shape = S[:d0] + (L,) + S[d0 + 1:nd - 1] + (A,)

    if M == 1:
        # No middle dims: this is just a batched minor-pair transpose.
        return _batched_transpose_last2(x.reshape(O, A, L)).reshape(new_shape)

    xr = x.reshape(O, A, M, L)

    # Fused single-pass kernel: one HBM round trip instead of three.
    ta = A if A <= 512 else 512
    tl = L if L <= 512 else 512

    def blk_phys(b_outer, b_lane):  # block (1, b_outer, M, b_lane), padded
        return b_outer * _round_up(M, 8) * _round_up(b_lane, 128) * itemsize

    def shrink(t):
        if t > 256:
            return 256
        if t > 128:
            return 128
        return t

    budget = 2 << 20
    while (max(blk_phys(ta, tl), blk_phys(tl, ta)) > budget
           and (ta > 128 or tl > 128)):
        if tl >= ta and tl > 128:
            tl = shrink(tl)
        elif ta > 128:
            ta = shrink(ta)
        else:
            break

    if M <= 32 and max(blk_phys(ta, tl), blk_phys(tl, ta)) <= budget:
        out = pl.pallas_call(
            _outer_minor_kernel,
            out_shape=jax.ShapeDtypeStruct((O, L, M, A), x.dtype),
            grid_spec=pltpu.PrefetchScalarGridSpec(
                num_scalar_prefetch=0,
                grid=(O, pl.cdiv(A, ta), pl.cdiv(L, tl)),
                in_specs=[pl.BlockSpec((1, ta, M, tl),
                                       lambda o, i, j: (o, i, 0, j))],
                out_specs=pl.BlockSpec((1, tl, M, ta),
                                       lambda o, i, j: (o, j, 0, i)),
            ),
            compiler_params=pltpu.CompilerParams(
                dimension_semantics=("parallel",) * 3),
        )(xr)
        return out.reshape(new_shape)

    # Fallback: two HBM passes (was three) — minor-pair transpose of
    # (A, M*L), then a non-minor block-permutation swap of (M, L).
    # TODO(synk): a fully general fused kernel for large M would need an
    # in-kernel 3-D (2,1,0) transpose, which Mosaic does not lower reliably.
    y = _batched_transpose_last2(xr.reshape(O, A, M * L))   # (O, M*L, A)
    y = y.reshape(O, M, L, A)
    z = _swap_nonminor(y, 1, 2)                             # (O, L, M, A)
    return z.reshape(new_shape)


# ---------------------------------------------------------------------------
# Dispatcher: x.transpose(dim0, dim1)
# ---------------------------------------------------------------------------
def transpose_pallas(x, dim0, dim1):
    nd = x.ndim
    d0, d1 = dim0 % nd, dim1 % nd
    if d0 > d1:
        d0, d1 = d1, d0
    if d0 == d1:
        return x
    S = x.shape
    new_shape = list(S)
    new_shape[d0], new_shape[d1] = S[d1], S[d0]
    new_shape = tuple(new_shape)

    # Layout-preserving swaps (a size-1 dim swapped with an adjacent-after-
    # squeeze dim) are pure reshapes — no data movement needed.
    mid = math.prod(S[d0 + 1:d1])
    if (S[d0] == 1 and S[d1] == 1) or ((S[d0] == 1 or S[d1] == 1) and mid == 1):
        return x.reshape(new_shape)

    if d0 == nd - 2 and d1 == nd - 1:
        G = math.prod(S[:d0])
        return _batched_transpose_last2(
            x.reshape(G, S[d0], S[d1])).reshape(new_shape)
    if d1 < nd - 1:
        return _swap_nonminor(x, d0, d1)
    return _swap_outer_minor(x, d0)


class Transpose:
    """Pallas TPU equivalent of the PyTorch Transpose(dim0, dim1) module."""

    def __init__(self, dim0, dim1):
        self.dim0 = dim0
        self.dim1 = dim1

    def __call__(self, x):
        return transpose_pallas(x, self.dim0, self.dim1)


# ---------------------------------------------------------------------------
if __name__ == "__main__":
    key = jax.random.PRNGKey(0)
    ks = jax.random.split(key, 7)

    # 1) Primary depth-model usage: Transpose(1, 2) on ViT tokens [B, 1+N, C]
    #    (small-shape fast path: one (197, 384) transpose per batch element).
    x1 = jax.random.normal(ks[0], (2, 197, 384), jnp.float32)
    out1 = jax.block_until_ready(Transpose(1, 2)(x1))
    assert out1.shape == (2, 384, 197), out1.shape
    assert bool(jnp.array_equal(out1, jnp.swapaxes(x1, 1, 2)))

    # 2) Aligned minor-pair swap with negative dims.
    x2 = jax.random.normal(ks[1], (2, 128, 256), jnp.float32)
    out2 = jax.block_until_ready(Transpose(-2, -1)(x2))
    assert bool(jnp.array_equal(out2, jnp.swapaxes(x2, -2, -1)))

    # 3) Ragged minor-pair swap large enough for the tiled/masked-edge path.
    x3 = jax.random.normal(ks[2], (1, 520, 1030), jnp.float32)
    out3 = jax.block_until_ready(Transpose(1, 2)(x3))
    assert bool(jnp.array_equal(out3, jnp.swapaxes(x3, 1, 2)))

    # 4) Swap of two non-minormost dims (block-permutation copy kernel).
    x4 = jax.random.normal(ks[3], (2, 4, 8, 128), jnp.float32)
    out4 = jax.block_until_ready(Transpose(1, 2)(x4))
    assert bool(jnp.array_equal(out4, jnp.swapaxes(x4, 1, 2)))

    # 5) Non-minor swap with middle dims and a 128-multiple trailing axis
    #    (exercises Mb > 1 and the sublane-dense trailing factorization).
    x5 = jax.random.normal(ks[4], (2, 3, 5, 4, 256), jnp.float32)
    out5 = jax.block_until_ready(Transpose(1, 3)(x5))
    assert bool(jnp.array_equal(out5, jnp.swapaxes(x5, 1, 3)))

    # 6) Outer <-> minormost swap: fused single-pass kernel.
    x6 = jax.random.normal(ks[5], (4, 8, 128), jnp.float32)
    out6 = jax.block_until_ready(Transpose(0, 2)(x6))
    assert bool(jnp.array_equal(out6, jnp.swapaxes(x6, 0, 2)))

    # 7) Outer <-> minormost swap with large middle (2-pass fallback).
    x7 = jax.random.normal(ks[6], (3, 40, 64), jnp.float32)
    out7 = jax.block_until_ready(Transpose(0, 2)(x7))
    assert bool(jnp.array_equal(out7, jnp.swapaxes(x7, 0, 2)))

    print("KERNEL_OK")
</pallas_src>

<mosaic_0001>
module attributes {stable_mosaic.version = 11 : i64} {
  func.func @_transpose_last2_kernel(%arg0: i32, %arg1: memref<1x197x384xf32, #tpu.memory_space<vmem>>, %arg2: memref<1x384x197xf32, #tpu.memory_space<vmem>>) attributes {dimension_semantics = [#tpu.dimension_semantics<parallel>], iteration_bounds = array<i64: 2>, scalar_prefetch = 0 : i64, scratch_operands = 0 : i64, tpu.core_type = #tpu.core_type<tc>, window_params = [{transform_indices = @transform_0, window_bounds = array<i64: 1, 197, 384>}, {transform_indices = @transform_1, window_bounds = array<i64: 1, 384, 197>}]} {
    %c0 = arith.constant 0 : index
    %c0_0 = arith.constant 0 : index
    %c0_1 = arith.constant 0 : index
    %0 = vector.load %arg1[%c0, %c0_0, %c0_1] : memref<1x197x384xf32, #tpu.memory_space<vmem>>, vector<1x197x384xf32>
    %1 = vector.shape_cast %0 : vector<1x197x384xf32> to vector<197x384xf32>
    %2 = tpu.transpose %1, [1, 0] : vector<197x384xf32> -> vector<384x197xf32>
    %c0_2 = arith.constant 0 : index
    %c0_3 = arith.constant 0 : index
    %c0_4 = arith.constant 0 : index
    %3 = vector.load %arg2[%c0_2, %c0_3, %c0_4] : memref<1x384x197xf32, #tpu.memory_space<vmem>>, vector<1x384x197xf32>
    %4 = vector.shape_cast %3 : vector<1x384x197xf32> to vector<384x197xf32>
    %5 = vector.shape_cast %2 : vector<384x197xf32> to vector<1x384x197xf32>
    tpu.vector_store %arg2[%c0_2, %c0_3, %c0_4], %5 {strides = array<i32>} : memref<1x384x197xf32, #tpu.memory_space<vmem>>, vector<1x384x197xf32>,
    return
  }
  func.func @transform_0(%arg0: i32) -> (i32, i32, i32) {
    %c0_i32 = arith.constant 0 : i32
    %c0_i32_0 = arith.constant 0 : i32
    %c0_i32_1 = arith.constant 0 : i32
    return %arg0, %c0_i32, %c0_i32_0 : i32, i32, i32
  }
  func.func @transform_1(%arg0: i32) -> (i32, i32, i32) {
    %c0_i32 = arith.constant 0 : i32
    %c0_i32_0 = arith.constant 0 : i32
    %c0_i32_1 = arith.constant 0 : i32
    return %arg0, %c0_i32, %c0_i32_0 : i32, i32, i32
  }
}

</mosaic_0001>

<llo_original>
// kernel: tpu_custom_call.1
$region0: #{tpu_custom_call.1}
  #allocation0 [shape = 'u32[]', space=smem, size = 0x4, offset = 0x4, fixed_abs, tag = 'smem constant byte address 0x4 - core index']
  #allocation1 [shape = 'u32[144,128]{1,0:T(1,128)}', space=vmem, size = 0x12000, scoped, tag = 'internal scratch']
  %s0 = inlined_call_operand.vmem [shape: f32[2,197,384], index: 0, kind: input, shape index: {}]
  %s1 = inlined_call_operand.vmem [shape: f32[2,384,197], index: 1, kind: output, shape index: {}]
  %s2 = sld [smem:[#allocation0]]
  $region37: #{tpu_custom_call.1} parent=0
    _
  %s4 = ssub.s32 1, %s2
  %s5 = scalar_select 0, %s4, %s2
  loop: start=0, step=1, limit=4
  $region2: #{tpu_custom_call.1} parent=0 // loop_pre_header
    _
  $region3: #{tpu_custom_call.1} parent=0 // loop_header
    %s7 = sphi 0, %s11
    %p8 = scmp.ge.s32.totalorder %s7, 4
    %s17 = sphi 0, %s19
    %s20 = sphi 0, %s17
    %s21 = sphi 0, %s20
    %s37 = sphi 0, %s21
    %s43 = sphi 0, %s45
    %s46 = sphi 0, %s43
    %s47 = sphi 0, %s46
    %s63 = sphi 0, %s47
  $region4: #{tpu_custom_call.1} parent=0 // loop_header_branch
    %10 = sbr.rel (%p8) target = $region8
  $region5: #{tpu_custom_call.1} parent=0 // loop_body
    %s12 = ssub.s32 %s7, 1
    %s13 = ssub.s32 %s7, 2
    %s14 = sadd.s32 %s7, 1
    %s15 = ssub.s32 %s7, %s14
    %p16 = scmp.eq.s32.totalorder %s15, 0
    %s18 = sadd.s32 %s17, 1
    %s19 = scalar_select %p16, %s17, %s18
    %p22 = pneg %p16
    %p23 = scmp.eq.s32.totalorder %s7, 1
    %p24 = por %p22, %p23
    %p25 = scmp.ne.s32.totalorder %s17, %s20
    %p26 = scmp.eq.s32.totalorder %s7, 0
    %p27 = por %p25, %p26
    %p28 = scmp.ne.s32.totalorder %s17, %s20
    %p29 = scmp.eq.s32.totalorder %s12, 1
    %p30 = por %p28, %p29
    %p31 = scmp.ne.s32.totalorder %s20, %s21
    %p32 = scmp.eq.s32.totalorder %s12, 0
    %p33 = por %p31, %p32
    %p34 = scmp.ne.s32.totalorder %s20, %s21
    %p35 = scmp.eq.s32.totalorder %s13, 1
    %p36 = por %p34, %p35
    %p38 = scmp.ne.s32.totalorder %s21, %s37
    %p39 = scmp.eq.s32.totalorder %s13, 0
    %p40 = por %p38, %p39
    %s41 = ssub.s32 %s7, %s14
    %p42 = scmp.eq.s32.totalorder %s41, 0
    %s44 = sadd.s32 %s43, 1
    %s45 = scalar_select %p42, %s43, %s44
    %p48 = pneg %p42
    %p49 = scmp.eq.s32.totalorder %s7, 1
    %p50 = por %p48, %p49
    %p51 = scmp.ne.s32.totalorder %s43, %s46
    %p52 = scmp.eq.s32.totalorder %s7, 0
    %p53 = por %p51, %p52
    %p54 = scmp.ne.s32.totalorder %s43, %s46
    %p55 = scmp.eq.s32.totalorder %s12, 1
    %p56 = por %p54, %p55
    %p57 = scmp.ne.s32.totalorder %s46, %s47
    %p58 = scmp.eq.s32.totalorder %s12, 0
    %p59 = por %p57, %p58
    %p60 = scmp.ne.s32.totalorder %s46, %s47
    %p61 = scmp.eq.s32.totalorder %s13, 1
    %p62 = por %p60, %p61
    %p64 = scmp.ne.s32.totalorder %s47, %s63
    %p65 = scmp.eq.s32.totalorder %s13, 0
    %p66 = por %p64, %p65
    %p67 = scmp.le.s32.totalorder 1, %s7
    %p68 = scmp.lt.s32.totalorder %s7, 3
    %p69 = pnand %p67, %p68
    %p70 = pneg %p69
    // Predicated region
    $region9: #{tpu_custom_call.1} parent=5 // pred_check
      _
    $region10: #{tpu_custom_call.1} parent=5 // pred_check_branch
      %72 = sbr.rel (%p69) target = $region12
    $region11: #{tpu_custom_call.1} parent=5 // pred_region
      %s73 = ssub.s32 %s7, 1
    $region12: #{tpu_custom_call.1} parent=5 // pred_fallthru
      _
    %p74 = scmp.lt.s32.totalorder %s7, 2
    // Predicated region
    $region13: #{tpu_custom_call.1} parent=5 // pred_check
      %p75 = pneg %p74
    $region14: #{tpu_custom_call.1} parent=5 // pred_check_branch
      %77 = sbr.rel (%p75) target = $region16
    $region15: #{tpu_custom_call.1} parent=5 // pred_region
      // Predicated region
      $region17: #{tpu_custom_call.1} parent=15 // pred_check
        %p78 = pneg %p27
      $region18: #{tpu_custom_call.1} parent=15 // pred_check_branch
        %80 = sbr.rel (%p78) target = $region20
      $region19: #{tpu_custom_call.1} parent=15 // pred_region
        %p81 = scmp.lt.s32.totalorder %s7, 1
        %s82 = scalar_select %p81, %s7, 1
        %s83 = smul.addr %s82, 75
        %s84 = smul.addr %s83, 8
        %s85 = scalar_lea.vmem %s0, %s84
      $region20: #{tpu_custom_call.1} parent=15 // pred_fallthru
        _
    $region16: #{tpu_custom_call.1} parent=5 // pred_fallthru
      _
    %p86 = scmp.le.s32.totalorder 1, %s7
    %p87 = scmp.lt.s32.totalorder %s7, 3
    %p88 = pnand %p86, %p87
    %p89 = pneg %p88
    // Predicated region
    $region21: #{tpu_custom_call.1} parent=5 // pred_check
      _
    $region22: #{tpu_custom_call.1} parent=5 // pred_check_branch
      %91 = sbr.rel (%p88) target = $region24
    $region23: #{tpu_custom_call.1} parent=5 // pred_region
      %s92 = ssub.s32 %s7, 1
      %p93 = scmp.lt.s32.totalorder %s12, 1
      %s94 = scalar_select %p93, %s12, 1
      %s95 = smul.addr %s94, 75
      %s96 = smul.addr %s95, 8
      %s97 = scalar_lea.vmem %s0, %s96
      %p98 = pneg %p33
      %p99 = pneg %p30
      %p100 = pneg %p59
      %p101 = pneg %p56
      %p102 = scmp.lt.s32.totalorder %s12, 1
      %s103 = scalar_select %p102, %s12, 1
      %s104 = smul.addr %s103, 96
      %s105 = smul.addr %s104, 8
      %s106 = scalar_lea.vmem %s1, %s105
      %p107 = scmp.lt.s32.totalorder %s12, 1
      %s108 = scalar_select %p107, %s12, 1
      %s109 = smul.addr %s108, 75
      %s110 = smul.addr %s109, 8
      %s111 = scalar_lea.vmem %s0, %s110
      %p112 = scmp.lt.s32.totalorder %s12, 1
      %s113 = scalar_select %p112, %s12, 1
      %s114 = smul.addr %s113, 96
      %s115 = smul.addr %s114, 8
      %s116 = scalar_lea.vmem %s1, %s115
      %v117 = vld [vmem:[%s111] sm:$0xff]
      %v118 = vld [vmem:[%s111 + $0x8] sm:$0xff]
      %v119 = vld [vmem:[%s111 + $0x10] sm:$0xff]
      %v120 = vld [vmem:[%s111 + $0x18] sm:$0xff]
      %v121 = vld [vmem:[%s111 + $0x20] sm:$0xff]
      %v122 = vld [vmem:[%s111 + $0x28] sm:$0xff]
      %v123 = vld [vmem:[%s111 + $0x30] sm:$0xff]
      %v124 = vld [vmem:[%s111 + $0x38] sm:$0xff]
      %v125 = vld [vmem:[%s111 + $0x40] sm:$0xff]
      %v126 = vld [vmem:[%s111 + $0x48] sm:$0xff]
      %v127 = vld [vmem:[%s111 + $0x50] sm:$0xff]
      %v128 = vld [vmem:[%s111 + $0x58] sm:$0xff]
      %v129 = vld [vmem:[%s111 + $0x60] sm:$0xff]
      %v130 = vld [vmem:[%s111 + $0x68] sm:$0xff]
      %v131 = vld [vmem:[%s111 + $0x70] sm:$0xff]
      %v132 = vld [vmem:[%s111 + $0x78] sm:$0xff]
      %v133 = vld [vmem:[%s111 + $0x80] sm:$0xff]
      %v134 = vld [vmem:[%s111 + $0x88] sm:$0xff]
      %v135 = vld [vmem:[%s111 + $0x90] sm:$0xff]
      %v136 = vld [vmem:[%s111 + $0x98] sm:$0xff]
      %v137 = vld [vmem:[%s111 + $0xa0] sm:$0xff]
      %v138 = vld [vmem:[%s111 + $0xa8] sm:$0xff]
      %v139 = vld [vmem:[%s111 + $0xb0] sm:$0xff]
      %v140 = vld [vmem:[%s111 + $0xb8] sm:$0xff]
      %v141 = vld [vmem:[%s111 + $0xc0] sm:$0xff]
      %v142 = vld [vmem:[%s111 + $0xc8] sm:$0xff]
      %v143 = vld [vmem:[%s111 + $0xd0] sm:$0xff]
      %v144 = vld [vmem:[%s111 + $0xd8] sm:$0xff]
      %v145 = vld [vmem:[%s111 + $0xe0] sm:$0xff]
      %v146 = vld [vmem:[%s111 + $0xe8] sm:$0xff]
      %v147 = vld [vmem:[%s111 + $0xf0] sm:$0xff]
      %v148 = vld [vmem:[%s111 + $0xf8] sm:$0xff]
      %v149 = vld [vmem:[%s111 + $0x100] sm:$0xff]
      %v150 = vld [vmem:[%s111 + $0x108] sm:$0xff]
      %v151 = vld [vmem:[%s111 + $0x110] sm:$0xff]
      %v152 = vld [vmem:[%s111 + $0x118] sm:$0xff]
      %v153 = vld [vmem:[%s111 + $0x120] sm:$0xff]
      %v154 = vld [vmem:[%s111 + $0x128] sm:$0xff]
      %v155 = vld [vmem:[%s111 + $0x130] sm:$0xff]
      %v156 = vld [vmem:[%s111 + $0x138] sm:$0xff]
      %v157 = vld [vmem:[%s111 + $0x140] sm:$0xff]
      %v158 = vld [vmem:[%s111 + $0x148] sm:$0xff]
      %v159 = vld [vmem:[%s111 + $0x150] sm:$0xff]
      %v160 = vld [vmem:[%s111 + $0x158] sm:$0xff]
      %v161 = vld [vmem:[%s111 + $0x160] sm:$0xff]
      %v162 = vld [vmem:[%s111 + $0x168] sm:$0xff]
      %v163 = vld [vmem:[%s111 + $0x170] sm:$0xff]
      %v164 = vld [vmem:[%s111 + $0x178] sm:$0xff]
      %v165 = vld [vmem:[%s111 + $0x180] sm:$0xff]
      %v166 = vld [vmem:[%s111 + $0x188] sm:$0xff]
      %v167 = vld [vmem:[%s111 + $0x190] sm:$0xff]
      %v168 = vld [vmem:[%s111 + $0x198] sm:$0xff]
      %v169 = vld [vmem:[%s111 + $0x1a0] sm:$0xff]
      %v170 = vld [vmem:[%s111 + $0x1a8] sm:$0xff]
      %v171 = vld [vmem:[%s111 + $0x1b0] sm:$0xff]
      %v172 = vld [vmem:[%s111 + $0x1b8] sm:$0xff]
      %v173 = vld [vmem:[%s111 + $0x1c0] sm:$0xff]
      %v174 = vld [vmem:[%s111 + $0x1c8] sm:$0xff]
      %v175 = vld [vmem:[%s111 + $0x1d0] sm:$0xff]
      %v176 = vld [vmem:[%s111 + $0x1d8] sm:$0xff]
      %v177 = vld [vmem:[%s111 + $0x1e0] sm:$0xff]
      %v178 = vld [vmem:[%s111 + $0x1e8] sm:$0xff]
      %v179 = vld [vmem:[%s111 + $0x1f0] sm:$0xff]
      %v180 = vld [vmem:[%s111 + $0x1f8] sm:$0xff]
      %v181 = vld [vmem:[%s111 + $0x200] sm:$0xff]
      %v182 = vld [vmem:[%s111 + $0x208] sm:$0xff]
      %v183 = vld [vmem:[%s111 + $0x210] sm:$0xff]
      %v184 = vld [vmem:[%s111 + $0x218] sm:$0xff]
      %v185 = vld [vmem:[%s111 + $0x220] sm:$0xff]
      %v186 = vld [vmem:[%s111 + $0x228] sm:$0xff]
      %v187 = vld [vmem:[%s111 + $0x230] sm:$0xff]
      %v188 = vld [vmem:[%s111 + $0x238] sm:$0xff]
      %v189 = vld [vmem:[%s111 + $0x240] sm:$0x1f]
      %v190 = vld [vmem:[%s111 + $0x248] sm:$0x1f]
      %v191 = vld [vmem:[%s111 + $0x250] sm:$0x1f]
      %192 = vxpose.xlu0.b32.start [1/16] %v117, 128
      %193 = vxpose.xlu0.b32.cont [2/16] %v120, 128
      %194 = vxpose.xlu0.b32.cont [3/16] %v123, 128
      %195 = vxpose.xlu0.b32.cont [4/16] %v126, 128
      %196 = vxpose.xlu0.b32.cont [5/16] %v129, 128
      %197 = vxpose.xlu0.b32.cont [6/16] %v132, 128
      %198 = vxpose.xlu0.b32.cont [7/16] %v135, 128
      %199 = vxpose.xlu0.b32.cont [8/16] %v138, 128
      %200 = vxpose.xlu0.b32.cont [9/16] %v141, 128
      %201 = vxpose.xlu0.b32.cont [10/16] %v144, 128
      %202 = vxpose.xlu0.b32.cont [11/16] %v147, 128
      %203 = vxpose.xlu0.b32.cont [12/16] %v150, 128
      %204 = vxpose.xlu0.b32.cont [13/16] %v153, 128
      %205 = vxpose.xlu0.b32.cont [14/16] %v156, 128
      %206 = vxpose.xlu0.b32.cont [15/16] %v159, 128
      %207 = vxpose.xlu0.b32.end [16/16] %v162, 128
      %v208 = vpop.trf.xlu0
      %v209 = vpop.trf.xlu0
      %v210 = vpop.trf.xlu0
      %v211 = vpop.trf.xlu0
      %v212 = vpop.trf.xlu0
      %v213 = vpop.trf.xlu0
      %v214 = vpop.trf.xlu0
      %v215 = vpop.trf.xlu0
      %v216 = vpop.trf.xlu0
      %v217 = vpop.trf.xlu0
      %v218 = vpop.trf.xlu0
      %v219 = vpop.trf.xlu0
      %v220 = vpop.trf.xlu0
      %v221 = vpop.trf.xlu0
      %v222 = vpop.trf.xlu0
      %v223 = vpop.trf.xlu0
      %224 = vxpose.xlu0.b32.start [1/16] %v118, 128
      %225 = vxpose.xlu0.b32.cont [2/16] %v121, 128
      %226 = vxpose.xlu0.b32.cont [3/16] %v124, 128
      %227 = vxpose.xlu0.b32.cont [4/16] %v127, 128
      %228 = vxpose.xlu0.b32.cont [5/16] %v130, 128
      %229 = vxpose.xlu0.b32.cont [6/16] %v133, 128
      %230 = vxpose.xlu0.b32.cont [7/16] %v136, 128
      %231 = vxpose.xlu0.b32.cont [8/16] %v139, 128
      %232 = vxpose.xlu0.b32.cont [9/16] %v142, 128
      %233 = vxpose.xlu0.b32.cont [10/16] %v145, 128
      %234 = vxpose.xlu0.b32.cont [11/16] %v148, 128
      %235 = vxpose.xlu0.b32.cont [12/16] %v151, 128
      %236 = vxpose.xlu0.b32.cont [13/16] %v154, 128
      %237 = vxpose.xlu0.b32.cont [14/16] %v157, 128
      %238 = vxpose.xlu0.b32.cont [15/16] %v160, 128
      %239 = vxpose.xlu0.b32.end [16/16] %v163, 128
      %v240 = vpop.trf.xlu0
      %v241 = vpop.trf.xlu0
      %v242 = vpop.trf.xlu0
      %v243 = vpop.trf.xlu0
      %v244 = vpop.trf.xlu0
      %v245 = vpop.trf.xlu0
      %v246 = vpop.trf.xlu0
      %v247 = vpop.trf.xlu0
      %v248 = vpop.trf.xlu0
      %v249 = vpop.trf.xlu0
      %v250 = vpop.trf.xlu0
      %v251 = vpop.trf.xlu0
      %v252 = vpop.trf.xlu0
      %v253 = vpop.trf.xlu0
      %v254 = vpop.trf.xlu0
      %v255 = vpop.trf.xlu0
      %256 = vxpose.xlu0.b32.start [1/16] %v119, 128
      %257 = vxpose.xlu0.b32.cont [2/16] %v122, 128
      %258 = vxpose.xlu0.b32.cont [3/16] %v125, 128
      %259 = vxpose.xlu0.b32.cont [4/16] %v128, 128
      %260 = vxpose.xlu0.b32.cont [5/16] %v131, 128
      %261 = vxpose.xlu0.b32.cont [6/16] %v134, 128
      %262 = vxpose.xlu0.b32.cont [7/16] %v137, 128
      %263 = vxpose.xlu0.b32.cont [8/16] %v140, 128
      %264 = vxpose.xlu0.b32.cont [9/16] %v143, 128
      %265 = vxpose.xlu0.b32.cont [10/16] %v146, 128
      %266 = vxpose.xlu0.b32.cont [11/16] %v149, 128
      %267 = vxpose.xlu0.b32.cont [12/16] %v152, 128
      %268 = vxpose.xlu0.b32.cont [13/16] %v155, 128
      %269 = vxpose.xlu0.b32.cont [14/16] %v158, 128
      %270 = vxpose.xlu0.b32.cont [15/16] %v161, 128
      %271 = vxpose.xlu0.b32.end [16/16] %v164, 128
      %v272 = vpop.trf.xlu0
      %v273 = vpop.trf.xlu0
      %v274 = vpop.trf.xlu0
      %v275 = vpop.trf.xlu0
      %v276 = vpop.trf.xlu0
      %v277 = vpop.trf.xlu0
      %v278 = vpop.trf.xlu0
      %v279 = vpop.trf.xlu0
      %v280 = vpop.trf.xlu0
      %v281 = vpop.trf.xlu0
      %v282 = vpop.trf.xlu0
      %v283 = vpop.trf.xlu0
      %v284 = vpop.trf.xlu0
      %v285 = vpop.trf.xlu0
      %v286 = vpop.trf.xlu0
      %v287 = vpop.trf.xlu0
      %288 = vxpose.xlu0.b32.start [1/16] %v165, 128
      %289 = vxpose.xlu0.b32.cont [2/16] %v168, 128
      %290 = vxpose.xlu0.b32.cont [3/16] %v171, 128
      %291 = vxpose.xlu0.b32.cont [4/16] %v174, 128
      %292 = vxpose.xlu0.b32.cont [5/16] %v177, 128
      %293 = vxpose.xlu0.b32.cont [6/16] %v180, 128
      %294 = vxpose.xlu0.b32.cont [7/16] %v183, 128
      %295 = vxpose.xlu0.b32.cont [8/16] %v186, 128
      %296 = vxpose.xlu0.b32.cont [9/16] %v189, 128
      %297 = vxpose.xlu0.b32.cont [10/16] 0.0, 128
      %298 = vxpose.xlu0.b32.cont [11/16] 0.0, 128
      %299 = vxpose.xlu0.b32.cont [12/16] 0.0, 128
      %300 = vxpose.xlu0.b32.cont [13/16] 0.0, 128
      %301 = vxpose.xlu0.b32.cont [14/16] 0.0, 128
      %302 = vxpose.xlu0.b32.cont [15/16] 0.0, 128
      %303 = vxpose.xlu0.b32.end [16/16] 0.0, 128
      %v304 = vpop.trf.xlu0
      %v305 = vpop.trf.xlu0
      %v306 = vpop.trf.xlu0
      %v307 = vpop.trf.xlu0
      %v308 = vpop.trf.xlu0
      %v309 = vpop.trf.xlu0
      %v310 = vpop.trf.xlu0
      %v311 = vpop.trf.xlu0
      %v312 = vpop.trf.xlu0
      %v313 = vpop.trf.xlu0
      %v314 = vpop.trf.xlu0
      %v315 = vpop.trf.xlu0
      %v316 = vpop.trf.xlu0
      %v317 = vpop.trf.xlu0
      %v318 = vpop.trf.xlu0
      %v319 = vpop.trf.xlu0
      %320 = vxpose.xlu0.b32.start [1/16] %v166, 128
      %321 = vxpose.xlu0.b32.cont [2/16] %v169, 128
      %322 = vxpose.xlu0.b32.cont [3/16] %v172, 128
      %323 = vxpose.xlu0.b32.cont [4/16] %v175, 128
      %324 = vxpose.xlu0.b32.cont [5/16] %v178, 128
      %325 = vxpose.xlu0.b32.cont [6/16] %v181, 128
      %326 = vxpose.xlu0.b32.cont [7/16] %v184, 128
      %327 = vxpose.xlu0.b32.cont [8/16] %v187, 128
      %328 = vxpose.xlu0.b32.cont [9/16] %v190, 128
      %329 = vxpose.xlu0.b32.cont [10/16] 0.0, 128
      %330 = vxpose.xlu0.b32.cont [11/16] 0.0, 128
      %331 = vxpose.xlu0.b32.cont [12/16] 0.0, 128
      %332 = vxpose.xlu0.b32.cont [13/16] 0.0, 128
      %333 = vxpose.xlu0.b32.cont [14/16] 0.0, 128
      %334 = vxpose.xlu0.b32.cont [15/16] 0.0, 128
      %335 = vxpose.xlu0.b32.end [16/16] 0.0, 128
      %v336 = vpop.trf.xlu0
      %v337 = vpop.trf.xlu0
      %v338 = vpop.trf.xlu0
      %v339 = vpop.trf.xlu0
      %v340 = vpop.trf.xlu0
      %v341 = vpop.trf.xlu0
      %v342 = vpop.trf.xlu0
      %v343 = vpop.trf.xlu0
      %v344 = vpop.trf.xlu0
      %v345 = vpop.trf.xlu0
      %v346 = vpop.trf.xlu0
      %v347 = vpop.trf.xlu0
      %v348 = vpop.trf.xlu0
      %v349 = vpop.trf.xlu0
      %v350 = vpop.trf.xlu0
      %v351 = vpop.trf.xlu0
      %352 = vxpose.xlu0.b32.start [1/16] %v167, 128
      %353 = vxpose.xlu0.b32.cont [2/16] %v170, 128
      %354 = vxpose.xlu0.b32.cont [3/16] %v173, 128
      %355 = vxpose.xlu0.b32.cont [4/16] %v176, 128
      %356 = vxpose.xlu0.b32.cont [5/16] %v179, 128
      %357 = vxpose.xlu0.b32.cont [6/16] %v182, 128
      %358 = vxpose.xlu0.b32.cont [7/16] %v185, 128
      %359 = vxpose.xlu0.b32.cont [8/16] %v188, 128
      %360 = vxpose.xlu0.b32.cont [9/16] %v191, 128
      %361 = vxpose.xlu0.b32.cont [10/16] 0.0, 128
      %362 = vxpose.xlu0.b32.cont [11/16] 0.0, 128
      %363 = vxpose.xlu0.b32.cont [12/16] 0.0, 128
      %364 = vxpose.xlu0.b32.cont [13/16] 0.0, 128
      %365 = vxpose.xlu0.b32.cont [14/16] 0.0, 128
      %366 = vxpose.xlu0.b32.cont [15/16] 0.0, 128
      %367 = vxpose.xlu0.b32.end [16/16] 0.0, 128
      %v368 = vpop.trf.xlu0
      %v369 = vpop.trf.xlu0
      %v370 = vpop.trf.xlu0
      %v371 = vpop.trf.xlu0
      %v372 = vpop.trf.xlu0
      %v373 = vpop.trf.xlu0
      %v374 = vpop.trf.xlu0
      %v375 = vpop.trf.xlu0
      %v376 = vpop.trf.xlu0
      %v377 = vpop.trf.xlu0
      %v378 = vpop.trf.xlu0
      %v379 = vpop.trf.xlu0
      %v380 = vpop.trf.xlu0
      %v381 = vpop.trf.xlu0
      %v382 = vpop.trf.xlu0
      %v383 = vpop.trf.xlu0
      %384 = vst [vmem:[%s116] sm:$0xff] %v208
      %vm385 = vcmask 564224
      %386 = vst.msk [vmem:[%s116 + $0x8] sm:$0xff] %vm385, %v304
      %387 = vst [vmem:[%s116 + $0x10] sm:$0xff] %v209
      %388 = vst.msk [vmem:[%s116 + $0x18] sm:$0xff] %vm385, %v305
      %389 = vst [vmem:[%s116 + $0x20] sm:$0xff] %v210
      %390 = vst.msk [vmem:[%s116 + $0x28] sm:$0xff] %vm385, %v306
      %391 = vst [vmem:[%s116 + $0x30] sm:$0xff] %v211
      %392 = vst.msk [vmem:[%s116 + $0x38] sm:$0xff] %vm385, %v307
      %393 = vst [vmem:[%s116 + $0x40] sm:$0xff] %v212
      %394 = vst.msk [vmem:[%s116 + $0x48] sm:$0xff] %vm385, %v308
      %395 = vst [vmem:[%s116 + $0x50] sm:$0xff] %v213
      %396 = vst.msk [vmem:[%s116 + $0x58] sm:$0xff] %vm385, %v309
      %397 = vst [vmem:[%s116 + $0x60] sm:$0xff] %v214
      %398 = vst.msk [vmem:[%s116 + $0x68] sm:$0xff] %vm385, %v310
      %399 = vst [vmem:[%s116 + $0x70] sm:$0xff] %v215
      %400 = vst.msk [vmem:[%s116 + $0x78] sm:$0xff] %vm385, %v311
      %401 = vst [vmem:[%s116 + $0x80] sm:$0xff] %v216
      %402 = vst.msk [vmem:[%s116 + $0x88] sm:$0xff] %vm385, %v312
      %403 = vst [vmem:[%s116 + $0x90] sm:$0xff] %v217
      %404 = vst.msk [vmem:[%s116 + $0x98] sm:$0xff] %vm385, %v313
      %405 = vst [vmem:[%s116 + $0xa0] sm:$0xff] %v218
      %406 = vst.msk [vmem:[%s116 + $0xa8] sm:$0xff] %vm385, %v314
      %407 = vst [vmem:[%s116 + $0xb0] sm:$0xff] %v219
      %408 = vst.msk [vmem:[%s116 + $0xb8] sm:$0xff] %vm385, %v315
      %409 = vst [vmem:[%s116 + $0xc0] sm:$0xff] %v220
      %410 = vst.msk [vmem:[%s116 + $0xc8] sm:$0xff] %vm385, %v316
      %411 = vst [vmem:[%s116 + $0xd0] sm:$0xff] %v221
      %412 = vst.msk [vmem:[%s116 + $0xd8] sm:$0xff] %vm385, %v317
      %413 = vst [vmem:[%s116 + $0xe0] sm:$0xff] %v222
      %414 = vst.msk [vmem:[%s116 + $0xe8] sm:$0xff] %vm385, %v318
      %415 = vst [vmem:[%s116 + $0xf0] sm:$0xff] %v223
      %416 = vst.msk [vmem:[%s116 + $0xf8] sm:$0xff] %vm385, %v319
      %417 = vst [vmem:[%s116 + $0x100] sm:$0xff] %v240
      %418 = vst.msk [vmem:[%s116 + $0x108] sm:$0xff] %vm385, %v336
      %419 = vst [vmem:[%s116 + $0x110] sm:$0xff] %v241
      %420 = vst.msk [vmem:[%s116 + $0x118] sm:$0xff] %vm385, %v337
      %421 = vst [vmem:[%s116 + $0x120] sm:$0xff] %v242
      %422 = vst.msk [vmem:[%s116 + $0x128] sm:$0xff] %vm385, %v338
      %423 = vst [vmem:[%s116 + $0x130] sm:$0xff] %v243
      %424 = vst.msk [vmem:[%s116 + $0x138] sm:$0xff] %vm385, %v339
      %425 = vst [vmem:[%s116 + $0x140] sm:$0xff] %v244
      %426 = vst.msk [vmem:[%s116 + $0x148] sm:$0xff] %vm385, %v340
      %427 = vst [vmem:[%s116 + $0x150] sm:$0xff] %v245
      %428 = vst.msk [vmem:[%s116 + $0x158] sm:$0xff] %vm385, %v341
      %429 = vst [vmem:[%s116 + $0x160] sm:$0xff] %v246
      %430 = vst.msk [vmem:[%s116 + $0x168] sm:$0xff] %vm385, %v342
      %431 = vst [vmem:[%s116 + $0x170] sm:$0xff] %v247
      %432 = vst.msk [vmem:[%s116 + $0x178] sm:$0xff] %vm385, %v343
      %433 = vst [vmem:[%s116 + $0x180] sm:$0xff] %v248
      %434 = vst.msk [vmem:[%s116 + $0x188] sm:$0xff] %vm385, %v344
      %435 = vst [vmem:[%s116 + $0x190] sm:$0xff] %v249
      %436 = vst.msk [vmem:[%s116 + $0x198] sm:$0xff] %vm385, %v345
      %437 = vst [vmem:[%s116 + $0x1a0] sm:$0xff] %v250
      %438 = vst.msk [vmem:[%s116 + $0x1a8] sm:$0xff] %vm385, %v346
      %439 = vst [vmem:[%s116 + $0x1b0] sm:$0xff] %v251
      %440 = vst.msk [vmem:[%s116 + $0x1b8] sm:$0xff] %vm385, %v347
      %441 = vst [vmem:[%s116 + $0x1c0] sm:$0xff] %v252
      %442 = vst.msk [vmem:[%s116 + $0x1c8] sm:$0xff] %vm385, %v348
      %443 = vst [vmem:[%s116 + $0x1d0] sm:$0xff] %v253
      %444 = vst.msk [vmem:[%s116 + $0x1d8] sm:$0xff] %vm385, %v349
      %445 = vst [vmem:[%s116 + $0x1e0] sm:$0xff] %v254
      %446 = vst.msk [vmem:[%s116 + $0x1e8] sm:$0xff] %vm385, %v350
      %447 = vst [vmem:[%s116 + $0x1f0] sm:$0xff] %v255
      %448 = vst.msk [vmem:[%s116 + $0x1f8] sm:$0xff] %vm385, %v351
      %449 = vst [vmem:[%s116 + $0x200] sm:$0xff] %v272
      %450 = vst.msk [vmem:[%s116 + $0x208] sm:$0xff] %vm385, %v368
      %451 = vst [vmem:[%s116 + $0x210] sm:$0xff] %v273
      %452 = vst.msk [vmem:[%s116 + $0x218] sm:$0xff] %vm385, %v369
      %453 = vst [vmem:[%s116 + $0x220] sm:$0xff] %v274
      %454 = vst.msk [vmem:[%s116 + $0x228] sm:$0xff] %vm385, %v370
      %455 = vst [vmem:[%s116 + $0x230] sm:$0xff] %v275
      %456 = vst.msk [vmem:[%s116 + $0x238] sm:$0xff] %vm385, %v371
      %457 = vst [vmem:[%s116 + $0x240] sm:$0xff] %v276
      %458 = vst.msk [vmem:[%s116 + $0x248] sm:$0xff] %vm385, %v372
      %459 = vst [vmem:[%s116 + $0x250] sm:$0xff] %v277
      %460 = vst.msk [vmem:[%s116 + $0x258] sm:$0xff] %vm385, %v373
      %461 = vst [vmem:[%s116 + $0x260] sm:$0xff] %v278
      %462 = vst.msk [vmem:[%s116 + $0x268] sm:$0xff] %vm385, %v374
      %463 = vst [vmem:[%s116 + $0x270] sm:$0xff] %v279
      %464 = vst.msk [vmem:[%s116 + $0x278] sm:$0xff] %vm385, %v375
      %465 = vst [vmem:[%s116 + $0x280] sm:$0xff] %v280
      %466 = vst.msk [vmem:[%s116 + $0x288] sm:$0xff] %vm385, %v376
      %467 = vst [vmem:[%s116 + $0x290] sm:$0xff] %v281
      %468 = vst.msk [vmem:[%s116 + $0x298] sm:$0xff] %vm385, %v377
      %469 = vst [vmem:[%s116 + $0x2a0] sm:$0xff] %v282
      %470 = vst.msk [vmem:[%s116 + $0x2a8] sm:$0xff] %vm385, %v378
      %471 = vst [vmem:[%s116 + $0x2b0] sm:$0xff] %v283
      %472 = vst.msk [vmem:[%s116 + $0x2b8] sm:$0xff] %vm385, %v379
      %473 = vst [vmem:[%s116 + $0x2c0] sm:$0xff] %v284
      %474 = vst.msk [vmem:[%s116 + $0x2c8] sm:$0xff] %vm385, %v380
      %475 = vst [vmem:[%s116 + $0x2d0] sm:$0xff] %v285
      %476 = vst.msk [vmem:[%s116 + $0x2d8] sm:$0xff] %vm385, %v381
      %477 = vst [vmem:[%s116 + $0x2e0] sm:$0xff] %v286
      %478 = vst.msk [vmem:[%s116 + $0x2e8] sm:$0xff] %vm385, %v382
      %479 = vst [vmem:[%s116 + $0x2f0] sm:$0xff] %v287
      %480 = vst.msk [vmem:[%s116 + $0x2f8] sm:$0xff] %vm385, %v383
      %p481 = scmp.lt.s32.totalorder %s12, 1
      %s482 = scalar_select %p481, %s12, 1
      %s483 = smul.addr %s482, 96
      %s484 = smul.addr %s483, 8
      %s485 = scalar_lea.vmem %s1, %s484
      // Predicated region
      $region25: #{tpu_custom_call.1} parent=23 // pred_check
        %p486 = pneg %p56
      $region26: #{tpu_custom_call.1} parent=23 // pred_check_branch
        %488 = sbr.rel (%p486) target = $region28
      $region27: #{tpu_custom_call.1} parent=23 // pred_region
        _
      $region28: #{tpu_custom_call.1} parent=23 // pred_fallthru
        _
    $region24: #{tpu_custom_call.1} parent=5 // pred_fallthru
      _
    %p489 = scmp.le.s32.totalorder 2, %s7
    // Predicated region
    $region29: #{tpu_custom_call.1} parent=5 // pred_check
      %p490 = pneg %p489
    $region30: #{tpu_custom_call.1} parent=5 // pred_check_branch
      %492 = sbr.rel (%p490) target = $region32
    $region31: #{tpu_custom_call.1} parent=5 // pred_region
      %s493 = ssub.s32 %s7, 2
      // Predicated region
      $region33: #{tpu_custom_call.1} parent=31 // pred_check
        %p494 = pneg %p62
      $region34: #{tpu_custom_call.1} parent=31 // pred_check_branch
        %496 = sbr.rel (%p494) target = $region36
      $region35: #{tpu_custom_call.1} parent=31 // pred_region
        %p497 = scmp.lt.s32.totalorder %s13, 1
        %s498 = scalar_select %p497, %s13, 1
        %s499 = smul.addr %s498, 96
        %s500 = smul.addr %s499, 8
        %s501 = scalar_lea.vmem %s1, %s500
      $region36: #{tpu_custom_call.1} parent=31 // pred_fallthru
        _
    $region32: #{tpu_custom_call.1} parent=5 // pred_fallthru
      _
  $region6: #{tpu_custom_call.1} parent=0 // loop_footer
    %s11 = sadd.s32 1, %s7
  $region7: #{tpu_custom_call.1} parent=0 // loop_footer_branch
    %6 = sbr.rel target = $region3
  $region8: #{tpu_custom_call.1} parent=0 // loop_exit
    _

</llo_original>
